<compile_context>
chip_gen: v5e
topology: v5e:2x2
jax: 0.10.0
libtpu: 0.0.40
codegen_flags: <defaults>
</compile_context>

<pallas_src>
import functools

import jax
import jax.numpy as jnp
from jax import lax
from jax.experimental import pallas as pl
from jax.experimental.pallas import tpu as pltpu

NEG_SLOPE = 0.01  # nn.LeakyReLU default negative_slope


def _leaky_relu(v):
    return jnp.maximum(v, NEG_SLOPE * v)


def _dense_block_kernel(x_ref, m_ref, w_ref, o_ref, *, H, W, C, beta, mxu_dtype):
    """Fused DenseBlock forward for one image.

    x_ref / o_ref : (1, C, HWp) VMEM  -- channels on sublanes, spatial on lanes
    m_ref         : (9, HWp)    VMEM  -- per-tap zero-padding validity masks (f32)
    w_ref         : (3, C, 9C+1) VMEM -- per conv: packed weights, last column = bias
    """
    x = x_ref[0].astype(jnp.float32)                      # (C, HWp)
    HWp = x.shape[-1]

    m_all = m_ref[...]                                    # (9, HWp) f32
    mask_rows = [m_all[t:t + 1, :] for t in range(9)]     # traced once, reused by all convs
    shifts = [(-((t // 3 - 1) * W + (t % 3 - 1))) % HWp for t in range(9)]
    ones_row = jnp.ones((1, HWp), jnp.float32)            # carries the bias through the matmul

    def conv3x3(inp, idx):
        # im2col: 9 lane-rotated + masked copies of inp stacked on sublanes,
        # then one MXU matmul against the packed (C, 9C+1) weight tile.
        taps = []
        for t in range(9):
            if t == 4:                                    # center tap: no shift / mask
                taps.append(inp)
            else:
                taps.append(pltpu.roll(inp, shifts[t], axis=1) * mask_rows[t])
        taps.append(ones_row)
        patches = jnp.concatenate(taps, axis=0).astype(mxu_dtype)   # (9C+1, HWp)
        w = w_ref[idx].astype(mxu_dtype)                            # (C, 9C+1)
        return jnp.dot(w, patches, preferred_element_type=jnp.float32)

    c1 = _leaky_relu(conv3x3(x, 0))
    t1 = x + c1
    c2 = _leaky_relu(conv3x3(t1, 1))
    # t2 = x + t1 + c2 ; t4 = x + t1 + t2 = 4x + 2*c1 + c2
    t4 = 4.0 * x + 2.0 * c1 + c2
    c3 = conv3x3(t4, 2)                                   # last_conv: no activation
    o_ref[0] = (x + beta * c3).astype(o_ref.dtype)


def _build_masks(H, W, HWp):
    """Host-side per-tap validity masks for 3x3 SAME conv on the flattened image."""
    HW = H * W
    idx = jnp.arange(HW)
    row, col = idx // W, idx % W
    masks = []
    for t in range(9):
        dy, dx = t // 3 - 1, t % 3 - 1
        ok = (row + dy >= 0) & (row + dy < H) & (col + dx >= 0) & (col + dx < W)
        masks.append(ok)
    m = jnp.stack(masks).astype(jnp.float32)              # (9, HW)
    if HWp != HW:
        m = jnp.pad(m, ((0, 0), (0, HWp - HW)))
    return m


def _pack_conv(w_hwio, b, C):
    """HWIO (3,3,C,C) + (C,) bias -> (C, 9C+1), column index = tap*C + ci (+ bias col)."""
    w = jnp.transpose(w_hwio.astype(jnp.float32), (3, 0, 1, 2)).reshape(C, 9 * C)
    return jnp.concatenate([w, b.astype(jnp.float32).reshape(C, 1)], axis=1)


def dense_block_forward(x_nchw, params, beta=0.5, mxu_dtype=jnp.float32):
    """params = [(w1,b1),(w2,b2),(w3,b3)], w in HWIO (3,3,C,C), b (C,).

    mxu_dtype=jnp.bfloat16 is recommended on v6e/v7x (full-rate MXU, f32 accum);
    the default f32 keeps bit-faithful numerics vs the PyTorch math.
    """
    N, C, H, W = x_nchw.shape
    HW = H * W
    HWp = ((HW + 127) // 128) * 128                       # lane-pad flattened spatial

    xf = x_nchw.reshape(N, C, HW)
    if HWp != HW:
        xf = jnp.pad(xf, ((0, 0), (0, 0), (0, HWp - HW)))

    masks = _build_masks(H, W, HWp)                       # (9, HWp)
    w_all = jnp.stack([_pack_conv(w, b, C) for (w, b) in params])   # (3, C, 9C+1)

    kernel = functools.partial(_dense_block_kernel, H=H, W=W, C=C,
                               beta=beta, mxu_dtype=mxu_dtype)

    xspec = pl.BlockSpec((1, C, HWp), lambda n: (n, 0, 0))

    out_flat = pl.pallas_call(
        kernel,
        out_shape=jax.ShapeDtypeStruct((N, C, HWp), x_nchw.dtype),
        grid=(N,),
        in_specs=[
            xspec,
            pl.BlockSpec((9, HWp), lambda n: (0, 0)),
            pl.BlockSpec((3, C, 9 * C + 1), lambda n: (0, 0, 0)),
        ],
        out_specs=xspec,
        compiler_params=pltpu.CompilerParams(dimension_semantics=("parallel",)),
    )(xf, masks, w_all)

    return out_flat[:, :, :HW].reshape(N, C, H, W)


def init_params(key, C):
    """Deterministic params: 3 used convs (conv1, conv2, last_conv), HWIO weights."""
    keys = jax.random.split(key, 6)
    bound = 1.0 / (C * 9) ** 0.5  # mimic PyTorch Conv2d default uniform bound
    params = []
    for i in range(3):
        w = jax.random.uniform(keys[2 * i], (3, 3, C, C), jnp.float32, -bound, bound)
        b = jax.random.uniform(keys[2 * i + 1], (C,), jnp.float32, -bound, bound)
        params.append((w, b))
    return params


def dense_block_ref(x_nchw, params, beta=0.5):
    """Pure-JAX reference (same math as the PyTorch forward)."""
    x = jnp.transpose(x_nchw, (0, 2, 3, 1))  # NHWC
    (w1, b1), (w2, b2), (w3, b3) = params

    def conv(inp, w, b):
        y = lax.conv_general_dilated(
            inp, w, window_strides=(1, 1), padding="SAME",
            dimension_numbers=("NHWC", "HWIO", "NHWC"),
            precision=lax.Precision.HIGHEST)
        return y + b

    c1 = _leaky_relu(conv(x, w1, b1))
    t1 = x + c1
    c2 = _leaky_relu(conv(t1, w2, b2))
    t2 = x + t1 + c2
    t4 = x + t1 + t2
    c3 = conv(t4, w3, b3)
    out = x + beta * c3
    return jnp.transpose(out, (0, 3, 1, 2))


if __name__ == "__main__":
    key = jax.random.PRNGKey(0)
    kx, kp = jax.random.split(key)
    N, C, H, W = 2, 4, 16, 16
    x = jax.random.normal(kx, (N, C, H, W), jnp.float32)
    params = init_params(kp, C)
    ref = dense_block_ref(x, params, beta=0.5)

    # f32 MXU path (bit-faithful): tight tolerance.
    out = jax.block_until_ready(dense_block_forward(x, params, beta=0.5))
    assert out.shape == (N, C, H, W), out.shape
    if not jnp.allclose(out, ref, atol=1e-4, rtol=1e-4):
        raise AssertionError(
            f"f32 kernel mismatch, max abs err={float(jnp.max(jnp.abs(out - ref)))}")

    # bf16-operand MXU path (recommended on v6e/v7x), f32 accumulate: loose tolerance.
    out_bf16 = jax.block_until_ready(
        dense_block_forward(x, params, beta=0.5, mxu_dtype=jnp.bfloat16))
    if not jnp.allclose(out_bf16, ref, atol=1e-1, rtol=1e-1):
        raise AssertionError(
            f"bf16 kernel mismatch, max abs err={float(jnp.max(jnp.abs(out_bf16 - ref)))}")

    # Non-128-multiple spatial size exercises the lane-padding + host-mask path.
    N2, C2, H2, W2 = 2, 4, 10, 12
    x2 = jax.random.normal(jax.random.PRNGKey(1), (N2, C2, H2, W2), jnp.float32)
    params2 = init_params(jax.random.PRNGKey(2), C2)
    out2 = jax.block_until_ready(dense_block_forward(x2, params2, beta=0.5))
    ref2 = dense_block_ref(x2, params2, beta=0.5)
    if not jnp.allclose(out2, ref2, atol=1e-4, rtol=1e-4):
        raise AssertionError(
            f"padded-HW kernel mismatch, max abs err={float(jnp.max(jnp.abs(out2 - ref2)))}")

    print("KERNEL_OK")
</pallas_src>

<mosaic_0001>
module attributes {stable_mosaic.version = 11 : i64} {
  func.func @_dense_block_kernel(%arg0: i32, %arg1: memref<1x4x256xf32, #tpu.memory_space<vmem>>, %arg2: memref<9x256xf32, #tpu.memory_space<vmem>>, %arg3: memref<3x4x37xf32, #tpu.memory_space<vmem>>, %arg4: memref<1x4x256xf32, #tpu.memory_space<vmem>>) attributes {dimension_semantics = [#tpu.dimension_semantics<parallel>], iteration_bounds = array<i64: 2>, scalar_prefetch = 0 : i64, scratch_operands = 0 : i64, tpu.core_type = #tpu.core_type<tc>, window_params = [{transform_indices = @transform_0, window_bounds = array<i64: 1, 4, 256>}, {pipeline_mode = #tpu.pipeline_mode<synchronous>, transform_indices = @transform_1, window_bounds = array<i64: 9, 256>}, {pipeline_mode = #tpu.pipeline_mode<synchronous>, transform_indices = @transform_2, window_bounds = array<i64: 3, 4, 37>}, {transform_indices = @transform_3, window_bounds = array<i64: 1, 4, 256>}]} {
    %c0 = arith.constant 0 : index
    %c0_0 = arith.constant 0 : index
    %c0_1 = arith.constant 0 : index
    %0 = vector.load %arg1[%c0, %c0_0, %c0_1] : memref<1x4x256xf32, #tpu.memory_space<vmem>>, vector<1x4x256xf32>
    %1 = vector.shape_cast %0 : vector<1x4x256xf32> to vector<4x256xf32>
    %c0_2 = arith.constant 0 : index
    %c0_3 = arith.constant 0 : index
    %2 = vector.load %arg2[%c0_2, %c0_3] : memref<9x256xf32, #tpu.memory_space<vmem>>, vector<9x256xf32>
    %3 = vector.extract_strided_slice %2 {offsets = [0, 0], sizes = [1, 256], strides = [1, 1]} : vector<9x256xf32> to vector<1x256xf32>
    %4 = vector.extract_strided_slice %2 {offsets = [1, 0], sizes = [1, 256], strides = [1, 1]} : vector<9x256xf32> to vector<1x256xf32>
    %5 = vector.extract_strided_slice %2 {offsets = [2, 0], sizes = [1, 256], strides = [1, 1]} : vector<9x256xf32> to vector<1x256xf32>
    %6 = vector.extract_strided_slice %2 {offsets = [3, 0], sizes = [1, 256], strides = [1, 1]} : vector<9x256xf32> to vector<1x256xf32>
    %7 = vector.extract_strided_slice %2 {offsets = [5, 0], sizes = [1, 256], strides = [1, 1]} : vector<9x256xf32> to vector<1x256xf32>
    %8 = vector.extract_strided_slice %2 {offsets = [6, 0], sizes = [1, 256], strides = [1, 1]} : vector<9x256xf32> to vector<1x256xf32>
    %9 = vector.extract_strided_slice %2 {offsets = [7, 0], sizes = [1, 256], strides = [1, 1]} : vector<9x256xf32> to vector<1x256xf32>
    %10 = vector.extract_strided_slice %2 {offsets = [8, 0], sizes = [1, 256], strides = [1, 1]} : vector<9x256xf32> to vector<1x256xf32>
    %cst = arith.constant 1.000000e+00 : f32
    %11 = vector.broadcast %cst : f32 to vector<1x256xf32>
    %c17_i32 = arith.constant 17 : i32
    %12 = tpu.dynamic_rotate %1 by %c17_i32 dim 1 : vector<4x256xf32>, i32 -> vector<4x256xf32>
    %13 = vector.broadcast %3 : vector<1x256xf32> to vector<4x256xf32>
    %14 = arith.mulf %12, %13 : vector<4x256xf32>
    %c16_i32 = arith.constant 16 : i32
    %15 = tpu.dynamic_rotate %1 by %c16_i32 dim 1 : vector<4x256xf32>, i32 -> vector<4x256xf32>
    %16 = vector.broadcast %4 : vector<1x256xf32> to vector<4x256xf32>
    %17 = arith.mulf %15, %16 : vector<4x256xf32>
    %c15_i32 = arith.constant 15 : i32
    %18 = tpu.dynamic_rotate %1 by %c15_i32 dim 1 : vector<4x256xf32>, i32 -> vector<4x256xf32>
    %19 = vector.broadcast %5 : vector<1x256xf32> to vector<4x256xf32>
    %20 = arith.mulf %18, %19 : vector<4x256xf32>
    %c1_i32 = arith.constant 1 : i32
    %21 = tpu.dynamic_rotate %1 by %c1_i32 dim 1 : vector<4x256xf32>, i32 -> vector<4x256xf32>
    %22 = vector.broadcast %6 : vector<1x256xf32> to vector<4x256xf32>
    %23 = arith.mulf %21, %22 : vector<4x256xf32>
    %c255_i32 = arith.constant 255 : i32
    %24 = tpu.dynamic_rotate %1 by %c255_i32 dim 1 : vector<4x256xf32>, i32 -> vector<4x256xf32>
    %25 = vector.broadcast %7 : vector<1x256xf32> to vector<4x256xf32>
    %26 = arith.mulf %24, %25 : vector<4x256xf32>
    %c241_i32 = arith.constant 241 : i32
    %27 = tpu.dynamic_rotate %1 by %c241_i32 dim 1 : vector<4x256xf32>, i32 -> vector<4x256xf32>
    %28 = vector.broadcast %8 : vector<1x256xf32> to vector<4x256xf32>
    %29 = arith.mulf %27, %28 : vector<4x256xf32>
    %c240_i32 = arith.constant 240 : i32
    %30 = tpu.dynamic_rotate %1 by %c240_i32 dim 1 : vector<4x256xf32>, i32 -> vector<4x256xf32>
    %31 = vector.broadcast %9 : vector<1x256xf32> to vector<4x256xf32>
    %32 = arith.mulf %30, %31 : vector<4x256xf32>
    %c239_i32 = arith.constant 239 : i32
    %33 = tpu.dynamic_rotate %1 by %c239_i32 dim 1 : vector<4x256xf32>, i32 -> vector<4x256xf32>
    %34 = vector.broadcast %10 : vector<1x256xf32> to vector<4x256xf32>
    %35 = arith.mulf %33, %34 : vector<4x256xf32>
    %36 = tpu.concatenate %14, %17, %20, %23, %1, %26, %29, %32, %35, %11 in 0 : vector<4x256xf32>, vector<4x256xf32>, vector<4x256xf32>, vector<4x256xf32>, vector<4x256xf32>, vector<4x256xf32>, vector<4x256xf32>, vector<4x256xf32>, vector<4x256xf32>, vector<1x256xf32> -> vector<37x256xf32>
    %c0_4 = arith.constant 0 : index
    %c0_5 = arith.constant 0 : index
    %c0_6 = arith.constant 0 : index
    %37 = vector.load %arg3[%c0_4, %c0_5, %c0_6] : memref<3x4x37xf32, #tpu.memory_space<vmem>>, vector<1x4x37xf32>
    %38 = vector.shape_cast %37 : vector<1x4x37xf32> to vector<4x37xf32>
    %cst_7 = arith.constant dense<0.000000e+00> : vector<4x256xf32>
    %39 = tpu.matmul %38, %36, %cst_7 {dimension_numbers = #tpu.dot_dimension_numbers<[1], [0], [0], [1], [0, 0, 1, 1], [], []>} : vector<4x37xf32>, vector<37x256xf32>, vector<4x256xf32> -> vector<4x256xf32>
    %cst_8 = arith.constant 0.00999999977 : f32
    %40 = vector.broadcast %cst_8 : f32 to vector<4x256xf32>
    %41 = arith.mulf %40, %39 : vector<4x256xf32>
    %42 = arith.maximumf %39, %41 : vector<4x256xf32>
    %43 = arith.addf %1, %42 : vector<4x256xf32>
    %c17_i32_9 = arith.constant 17 : i32
    %44 = tpu.dynamic_rotate %43 by %c17_i32_9 dim 1 : vector<4x256xf32>, i32 -> vector<4x256xf32>
    %45 = vector.broadcast %3 : vector<1x256xf32> to vector<4x256xf32>
    %46 = arith.mulf %44, %45 : vector<4x256xf32>
    %c16_i32_10 = arith.constant 16 : i32
    %47 = tpu.dynamic_rotate %43 by %c16_i32_10 dim 1 : vector<4x256xf32>, i32 -> vector<4x256xf32>
    %48 = vector.broadcast %4 : vector<1x256xf32> to vector<4x256xf32>
    %49 = arith.mulf %47, %48 : vector<4x256xf32>
    %c15_i32_11 = arith.constant 15 : i32
    %50 = tpu.dynamic_rotate %43 by %c15_i32_11 dim 1 : vector<4x256xf32>, i32 -> vector<4x256xf32>
    %51 = vector.broadcast %5 : vector<1x256xf32> to vector<4x256xf32>
    %52 = arith.mulf %50, %51 : vector<4x256xf32>
    %c1_i32_12 = arith.constant 1 : i32
    %53 = tpu.dynamic_rotate %43 by %c1_i32_12 dim 1 : vector<4x256xf32>, i32 -> vector<4x256xf32>
    %54 = vector.broadcast %6 : vector<1x256xf32> to vector<4x256xf32>
    %55 = arith.mulf %53, %54 : vector<4x256xf32>
    %c255_i32_13 = arith.constant 255 : i32
    %56 = tpu.dynamic_rotate %43 by %c255_i32_13 dim 1 : vector<4x256xf32>, i32 -> vector<4x256xf32>
    %57 = vector.broadcast %7 : vector<1x256xf32> to vector<4x256xf32>
    %58 = arith.mulf %56, %57 : vector<4x256xf32>
    %c241_i32_14 = arith.constant 241 : i32
    %59 = tpu.dynamic_rotate %43 by %c241_i32_14 dim 1 : vector<4x256xf32>, i32 -> vector<4x256xf32>
    %60 = vector.broadcast %8 : vector<1x256xf32> to vector<4x256xf32>
    %61 = arith.mulf %59, %60 : vector<4x256xf32>
    %c240_i32_15 = arith.constant 240 : i32
    %62 = tpu.dynamic_rotate %43 by %c240_i32_15 dim 1 : vector<4x256xf32>, i32 -> vector<4x256xf32>
    %63 = vector.broadcast %9 : vector<1x256xf32> to vector<4x256xf32>
    %64 = arith.mulf %62, %63 : vector<4x256xf32>
    %c239_i32_16 = arith.constant 239 : i32
    %65 = tpu.dynamic_rotate %43 by %c239_i32_16 dim 1 : vector<4x256xf32>, i32 -> vector<4x256xf32>
    %66 = vector.broadcast %10 : vector<1x256xf32> to vector<4x256xf32>
    %67 = arith.mulf %65, %66 : vector<4x256xf32>
    %68 = tpu.concatenate %46, %49, %52, %55, %43, %58, %61, %64, %67, %11 in 0 : vector<4x256xf32>, vector<4x256xf32>, vector<4x256xf32>, vector<4x256xf32>, vector<4x256xf32>, vector<4x256xf32>, vector<4x256xf32>, vector<4x256xf32>, vector<4x256xf32>, vector<1x256xf32> -> vector<37x256xf32>
    %c1 = arith.constant 1 : index
    %c0_17 = arith.constant 0 : index
    %c0_18 = arith.constant 0 : index
    %69 = vector.load %arg3[%c1, %c0_17, %c0_18] : memref<3x4x37xf32, #tpu.memory_space<vmem>>, vector<1x4x37xf32>
    %70 = vector.shape_cast %69 : vector<1x4x37xf32> to vector<4x37xf32>
    %cst_19 = arith.constant dense<0.000000e+00> : vector<4x256xf32>
    %71 = tpu.matmul %70, %68, %cst_19 {dimension_numbers = #tpu.dot_dimension_numbers<[1], [0], [0], [1], [0, 0, 1, 1], [], []>} : vector<4x37xf32>, vector<37x256xf32>, vector<4x256xf32> -> vector<4x256xf32>
    %cst_20 = arith.constant 0.00999999977 : f32
    %72 = vector.broadcast %cst_20 : f32 to vector<4x256xf32>
    %73 = arith.mulf %72, %71 : vector<4x256xf32>
    %74 = arith.maximumf %71, %73 : vector<4x256xf32>
    %cst_21 = arith.constant 4.000000e+00 : f32
    %75 = vector.broadcast %cst_21 : f32 to vector<4x256xf32>
    %76 = arith.mulf %75, %1 : vector<4x256xf32>
    %cst_22 = arith.constant 2.000000e+00 : f32
    %77 = vector.broadcast %cst_22 : f32 to vector<4x256xf32>
    %78 = arith.mulf %77, %42 : vector<4x256xf32>
    %79 = arith.addf %76, %78 : vector<4x256xf32>
    %80 = arith.addf %79, %74 : vector<4x256xf32>
    %c17_i32_23 = arith.constant 17 : i32
    %81 = tpu.dynamic_rotate %80 by %c17_i32_23 dim 1 : vector<4x256xf32>, i32 -> vector<4x256xf32>
    %82 = vector.broadcast %3 : vector<1x256xf32> to vector<4x256xf32>
    %83 = arith.mulf %81, %82 : vector<4x256xf32>
    %c16_i32_24 = arith.constant 16 : i32
    %84 = tpu.dynamic_rotate %80 by %c16_i32_24 dim 1 : vector<4x256xf32>, i32 -> vector<4x256xf32>
    %85 = vector.broadcast %4 : vector<1x256xf32> to vector<4x256xf32>
    %86 = arith.mulf %84, %85 : vector<4x256xf32>
    %c15_i32_25 = arith.constant 15 : i32
    %87 = tpu.dynamic_rotate %80 by %c15_i32_25 dim 1 : vector<4x256xf32>, i32 -> vector<4x256xf32>
    %88 = vector.broadcast %5 : vector<1x256xf32> to vector<4x256xf32>
    %89 = arith.mulf %87, %88 : vector<4x256xf32>
    %c1_i32_26 = arith.constant 1 : i32
    %90 = tpu.dynamic_rotate %80 by %c1_i32_26 dim 1 : vector<4x256xf32>, i32 -> vector<4x256xf32>
    %91 = vector.broadcast %6 : vector<1x256xf32> to vector<4x256xf32>
    %92 = arith.mulf %90, %91 : vector<4x256xf32>
    %c255_i32_27 = arith.constant 255 : i32
    %93 = tpu.dynamic_rotate %80 by %c255_i32_27 dim 1 : vector<4x256xf32>, i32 -> vector<4x256xf32>
    %94 = vector.broadcast %7 : vector<1x256xf32> to vector<4x256xf32>
    %95 = arith.mulf %93, %94 : vector<4x256xf32>
    %c241_i32_28 = arith.constant 241 : i32
    %96 = tpu.dynamic_rotate %80 by %c241_i32_28 dim 1 : vector<4x256xf32>, i32 -> vector<4x256xf32>
    %97 = vector.broadcast %8 : vector<1x256xf32> to vector<4x256xf32>
    %98 = arith.mulf %96, %97 : vector<4x256xf32>
    %c240_i32_29 = arith.constant 240 : i32
    %99 = tpu.dynamic_rotate %80 by %c240_i32_29 dim 1 : vector<4x256xf32>, i32 -> vector<4x256xf32>
    %100 = vector.broadcast %9 : vector<1x256xf32> to vector<4x256xf32>
    %101 = arith.mulf %99, %100 : vector<4x256xf32>
    %c239_i32_30 = arith.constant 239 : i32
    %102 = tpu.dynamic_rotate %80 by %c239_i32_30 dim 1 : vector<4x256xf32>, i32 -> vector<4x256xf32>
    %103 = vector.broadcast %10 : vector<1x256xf32> to vector<4x256xf32>
    %104 = arith.mulf %102, %103 : vector<4x256xf32>
    %105 = tpu.concatenate %83, %86, %89, %92, %80, %95, %98, %101, %104, %11 in 0 : vector<4x256xf32>, vector<4x256xf32>, vector<4x256xf32>, vector<4x256xf32>, vector<4x256xf32>, vector<4x256xf32>, vector<4x256xf32>, vector<4x256xf32>, vector<4x256xf32>, vector<1x256xf32> -> vector<37x256xf32>
    %c2 = arith.constant 2 : index
    %c0_31 = arith.constant 0 : index
    %c0_32 = arith.constant 0 : index
    %106 = vector.load %arg3[%c2, %c0_31, %c0_32] : memref<3x4x37xf32, #tpu.memory_space<vmem>>, vector<1x4x37xf32>
    %107 = vector.shape_cast %106 : vector<1x4x37xf32> to vector<4x37xf32>
    %cst_33 = arith.constant dense<0.000000e+00> : vector<4x256xf32>
    %108 = tpu.matmul %107, %105, %cst_33 {dimension_numbers = #tpu.dot_dimension_numbers<[1], [0], [0], [1], [0, 0, 1, 1], [], []>} : vector<4x37xf32>, vector<37x256xf32>, vector<4x256xf32> -> vector<4x256xf32>
    %cst_34 = arith.constant 5.000000e-01 : f32
    %109 = vector.broadcast %cst_34 : f32 to vector<4x256xf32>
    %110 = arith.mulf %109, %108 : vector<4x256xf32>
    %111 = arith.addf %1, %110 : vector<4x256xf32>
    %c0_35 = arith.constant 0 : index
    %c0_36 = arith.constant 0 : index
    %c0_37 = arith.constant 0 : index
    %112 = vector.load %arg4[%c0_35, %c0_36, %c0_37] : memref<1x4x256xf32, #tpu.memory_space<vmem>>, vector<1x4x256xf32>
    %113 = vector.shape_cast %112 : vector<1x4x256xf32> to vector<4x256xf32>
    %114 = vector.shape_cast %111 : vector<4x256xf32> to vector<1x4x256xf32>
    tpu.vector_store %arg4[%c0_35, %c0_36, %c0_37], %114 {strides = array<i32>} : memref<1x4x256xf32, #tpu.memory_space<vmem>>, vector<1x4x256xf32>,
    return
  }
  func.func @transform_0(%arg0: i32) -> (i32, i32, i32) {
    %c0_i32 = arith.constant 0 : i32
    %c0_i32_0 = arith.constant 0 : i32
    %c0_i32_1 = arith.constant 0 : i32
    return %arg0, %c0_i32, %c0_i32_0 : i32, i32, i32
  }
  func.func @transform_1(%arg0: i32) -> (i32, i32) {
    %c0_i32 = arith.constant 0 : i32
    %c0_i32_0 = arith.constant 0 : i32
    %c0_i32_1 = arith.constant 0 : i32
    return %c0_i32, %c0_i32_0 : i32, i32
  }
  func.func @transform_2(%arg0: i32) -> (i32, i32, i32) {
    %c0_i32 = arith.constant 0 : i32
    %c0_i32_0 = arith.constant 0 : i32
    %c0_i32_1 = arith.constant 0 : i32
    %c0_i32_2 = arith.constant 0 : i32
    return %c0_i32, %c0_i32_0, %c0_i32_1 : i32, i32, i32
  }
  func.func @transform_3(%arg0: i32) -> (i32, i32, i32) {
    %c0_i32 = arith.constant 0 : i32
    %c0_i32_0 = arith.constant 0 : i32
    %c0_i32_1 = arith.constant 0 : i32
    return %arg0, %c0_i32, %c0_i32_0 : i32, i32, i32
  }
}

</mosaic_0001>

<llo_original>
// kernel: tpu_custom_call.1
$region0: #{tpu_custom_call.1}
  #allocation0 [shape = 'u32[]', space=smem, size = 0x4, offset = 0x4, fixed_abs, tag = 'smem constant byte address 0x4 - core index']
  #allocation1 [shape = 'u32[72,128]{1,0:T(1,128)}', space=vmem, size = 0x9000, scoped, tag = 'internal scratch']
  %s0 = inlined_call_operand.hbm [shape: f32[2,4,256], index: 0, kind: input, shape index: {}]
  %s1 = inlined_call_operand.hbm [shape: f32[9,256], index: 1, kind: input, shape index: {}]
  %s2 = inlined_call_operand.hbm [shape: f32[3,4,37], index: 2, kind: input, shape index: {}]
  %s3 = inlined_call_operand.hbm [shape: f32[2,4,256], index: 3, kind: output, shape index: {}]
  %s4 = sld [smem:[#allocation0]]
  $region57: #{tpu_custom_call.1} parent=0
    _
  %s6 = ssub.s32 1, %s4
  %s7 = scalar_select 0, %s6, %s4
  $region1: #{tpu_custom_call.1} parent=0
    #allocation2 [shape = 'u8[8192]{0}', space=vmem, size = 0x2000, scoped, tag = 'input window, operand 0']
    #allocation3 [shape = 's32[2]{0}', space=sflag, size = 0x8, scoped, tag = 'scoped memory for tpu_custom_call.1']
    #allocation4 [shape = 's32[2]{0}', space=sflag, size = 0x8, scoped, tag = 'scoped memory for tpu_custom_call.1']
    #allocation5 [shape = 'u8[16384]{0}', space=vmem, size = 0x4000, scoped, tag = 'input window, operand 1, single buffered']
    #allocation6 [shape = 's32[1]{0}', space=sflag, size = 0x4, scoped, tag = 'scoped memory for tpu_custom_call.1']
    #allocation7 [shape = 'u8[6144]{0}', space=vmem, size = 0x1800, scoped, tag = 'input window, operand 2, single buffered']
    #allocation8 [shape = 'u8[8192]{0}', space=vmem, size = 0x2000, scoped, tag = 'output window, operand 0']
    %8 = vsyncpa [#allocation3], 0
    %s9 = scalar_lea.sflag [#allocation3], 1
    %10 = vsyncpa %s9, 0
    %11 = vsyncpa [#allocation6], 0
    %12 = vsyncpa [#allocation4], 0
    %s13 = scalar_lea.sflag [#allocation4], 1
    %14 = vsyncpa %s13, 0
    loop: start=0, step=1, limit=4
    $region2: #{tpu_custom_call.1} parent=1 // loop_pre_header
      _
    $region3: #{tpu_custom_call.1} parent=1 // loop_header
      %s16 = sphi 0, %s20
      %p17 = scmp.ge.s32.totalorder %s16, 4
      %s26 = sphi 0, %s28
      %s29 = sphi 0, %s26
      %s30 = sphi 0, %s29
      %s46 = sphi 0, %s30
      %s50 = sphi 0, %s50
      %s52 = sphi 0, %s50
      %s53 = sphi 0, %s52
      %s67 = sphi 0, %s53
      %s71 = sphi 0, %s71
      %s73 = sphi 0, %s71
      %s74 = sphi 0, %s73
      %s88 = sphi 0, %s74
      %s94 = sphi 0, %s96
      %s97 = sphi 0, %s94
      %s98 = sphi 0, %s97
      %s114 = sphi 0, %s98
    $region4: #{tpu_custom_call.1} parent=1 // loop_header_branch
      %19 = sbr.rel (%p17) target = $region8
    $region5: #{tpu_custom_call.1} parent=1 // loop_body
      %s21 = ssub.s32 %s16, 1
      %s22 = ssub.s32 %s16, 2
      %s23 = sadd.s32 %s16, 1
      %s24 = ssub.s32 %s16, %s23
      %p25 = scmp.eq.s32.totalorder %s24, 0
      %s27 = sadd.s32 %s26, 1
      %s28 = scalar_select %p25, %s26, %s27
      %p31 = pneg %p25
      %p32 = scmp.eq.s32.totalorder %s16, 1
      %p33 = por %p31, %p32
      %p34 = scmp.ne.s32.totalorder %s26, %s29
      %p35 = scmp.eq.s32.totalorder %s16, 0
      %p36 = por %p34, %p35
      %p37 = scmp.ne.s32.totalorder %s26, %s29
      %p38 = scmp.eq.s32.totalorder %s21, 1
      %p39 = por %p37, %p38
      %p40 = scmp.ne.s32.totalorder %s29, %s30
      %p41 = scmp.eq.s32.totalorder %s21, 0
      %p42 = por %p40, %p41
      %p43 = scmp.ne.s32.totalorder %s29, %s30
      %p44 = scmp.eq.s32.totalorder %s22, 1
      %p45 = por %p43, %p44
      %p47 = scmp.ne.s32.totalorder %s30, %s46
      %p48 = scmp.eq.s32.totalorder %s22, 0
      %p49 = por %p47, %p48
      %s51 = sadd.s32 %s50, 1
      %p54 = scmp.eq.s32.totalorder %s16, 1
      %p55 = scmp.ne.s32.totalorder %s50, %s52
      %p56 = scmp.eq.s32.totalorder %s16, 0
      %p57 = por %p55, %p56
      %p58 = scmp.ne.s32.totalorder %s50, %s52
      %p59 = scmp.eq.s32.totalorder %s21, 1
      %p60 = por %p58, %p59
      %p61 = scmp.ne.s32.totalorder %s52, %s53
      %p62 = scmp.eq.s32.totalorder %s21, 0
      %p63 = por %p61, %p62
      %p64 = scmp.ne.s32.totalorder %s52, %s53
      %p65 = scmp.eq.s32.totalorder %s22, 1
      %p66 = por %p64, %p65
      %p68 = scmp.ne.s32.totalorder %s53, %s67
      %p69 = scmp.eq.s32.totalorder %s22, 0
      %p70 = por %p68, %p69
      %s72 = sadd.s32 %s71, 1
      %p75 = scmp.eq.s32.totalorder %s16, 1
      %p76 = scmp.ne.s32.totalorder %s71, %s73
      %p77 = scmp.eq.s32.totalorder %s16, 0
      %p78 = por %p76, %p77
      %p79 = scmp.ne.s32.totalorder %s71, %s73
      %p80 = scmp.eq.s32.totalorder %s21, 1
      %p81 = por %p79, %p80
      %p82 = scmp.ne.s32.totalorder %s73, %s74
      %p83 = scmp.eq.s32.totalorder %s21, 0
      %p84 = por %p82, %p83
      %p85 = scmp.ne.s32.totalorder %s73, %s74
      %p86 = scmp.eq.s32.totalorder %s22, 1
      %p87 = por %p85, %p86
      %p89 = scmp.ne.s32.totalorder %s74, %s88
      %p90 = scmp.eq.s32.totalorder %s22, 0
      %p91 = por %p89, %p90
      %s92 = ssub.s32 %s16, %s23
      %p93 = scmp.eq.s32.totalorder %s92, 0
      %s95 = sadd.s32 %s94, 1
      %s96 = scalar_select %p93, %s94, %s95
      %p99 = pneg %p93
      %p100 = scmp.eq.s32.totalorder %s16, 1
      %p101 = por %p99, %p100
      %p102 = scmp.ne.s32.totalorder %s94, %s97
      %p103 = scmp.eq.s32.totalorder %s16, 0
      %p104 = por %p102, %p103
      %p105 = scmp.ne.s32.totalorder %s94, %s97
      %p106 = scmp.eq.s32.totalorder %s21, 1
      %p107 = por %p105, %p106
      %p108 = scmp.ne.s32.totalorder %s97, %s98
      %p109 = scmp.eq.s32.totalorder %s21, 0
      %p110 = por %p108, %p109
      %p111 = scmp.ne.s32.totalorder %s97, %s98
      %p112 = scmp.eq.s32.totalorder %s22, 1
      %p113 = por %p111, %p112
      %p115 = scmp.ne.s32.totalorder %s98, %s114
      %p116 = scmp.eq.s32.totalorder %s22, 0
      %p117 = por %p115, %p116
      %p118 = scmp.le.s32.totalorder 1, %s16
      %p119 = scmp.lt.s32.totalorder %s16, 3
      %p120 = pnand %p118, %p119
      %p121 = pneg %p120
      // Predicated region
      $region9: #{tpu_custom_call.1} parent=5 // pred_check
        _
      $region10: #{tpu_custom_call.1} parent=5 // pred_check_branch
        %123 = sbr.rel (%p120) target = $region12
      $region11: #{tpu_custom_call.1} parent=5 // pred_region
        %s124 = ssub.s32 %s16, 1
        // Predicated region
        $region13: #{tpu_custom_call.1} parent=11 // pred_check
          %p125 = pneg %p63
        $region14: #{tpu_custom_call.1} parent=11 // pred_check_branch
          %127 = sbr.rel (%p125) target = $region16
        $region15: #{tpu_custom_call.1} parent=11 // pred_region
          %129 = vsyncadd [#allocation6], 0
          %s130 = sshll.u32 %s1, 4
          %s131 = int_to_ptr.hbm [resolvable:$true] %s130
          %s132 = sshll.u32 [#allocation5], 4
          %s133 = int_to_ptr.vmem [resolvable:$true] %s132
          %138 = dma.hbm_to_vmem [thread:$0]  %s131, 512, %s133, [#allocation6], 256, 256, 16
        $region16: #{tpu_custom_call.1} parent=11 // pred_fallthru
          _
        // Predicated region
        $region17: #{tpu_custom_call.1} parent=11 // pred_check
          %p139 = pneg %p84
        $region18: #{tpu_custom_call.1} parent=11 // pred_check_branch
          %141 = sbr.rel (%p139) target = $region20
        $region19: #{tpu_custom_call.1} parent=11 // pred_region
          %143 = vsyncadd [#allocation6], 0
          %s144 = sshll.u32 %s2, 4
          %s145 = int_to_ptr.hbm [resolvable:$true] %s144
          %s146 = sshll.u32 [#allocation7], 4
          %s147 = int_to_ptr.vmem [resolvable:$true] %s146
          %152 = dma.hbm_to_vmem [thread:$0]  %s145, 192, %s147, [#allocation6], 64, 64, 4
        $region20: #{tpu_custom_call.1} parent=11 // pred_fallthru
          _
      $region12: #{tpu_custom_call.1} parent=5 // pred_fallthru
        _
      %p153 = scmp.lt.s32.totalorder %s16, 2
      // Predicated region
      $region21: #{tpu_custom_call.1} parent=5 // pred_check
        %p154 = pneg %p153
      $region22: #{tpu_custom_call.1} parent=5 // pred_check_branch
        %156 = sbr.rel (%p154) target = $region24
      $region23: #{tpu_custom_call.1} parent=5 // pred_region
        // Predicated region
        $region25: #{tpu_custom_call.1} parent=23 // pred_check
          %p157 = pneg %p36
        $region26: #{tpu_custom_call.1} parent=23 // pred_check_branch
          %159 = sbr.rel (%p157) target = $region28
        $region27: #{tpu_custom_call.1} parent=23 // pred_region
          %s160 = sand.u32 %s26, 1
          %s161 = scalar_lea.sflag [#allocation3], %s160
          %s162 = sand.u32 %s26, 1
          %s163 = smul.addr %s162, 8
          %s164 = scalar_lea.vmem [#allocation2], %s163
          %166 = vsyncadd %s161, 0
          %s167 = smul.addr %s16, 2
          %s168 = smul.addr %s167, 4
          %s169 = scalar_lea.hbm %s0, %s168
          %s171 = sshll.u32 %s169, 4
          %s172 = int_to_ptr.hbm [resolvable:$true] %s171
          %s173 = sshll.u32 %s164, 4
          %s174 = int_to_ptr.vmem [resolvable:$true] %s173
          %176 = dma.hbm_to_vmem [thread:$0]  %s172, 128, %s174, %s161
        $region28: #{tpu_custom_call.1} parent=23 // pred_fallthru
          _
      $region24: #{tpu_custom_call.1} parent=5 // pred_fallthru
        _
      %p177 = scmp.le.s32.totalorder 1, %s16
      %p178 = scmp.lt.s32.totalorder %s16, 3
      %p179 = pnand %p177, %p178
      %p180 = pneg %p179
      // Predicated region
      $region29: #{tpu_custom_call.1} parent=5 // pred_check
        _
      $region30: #{tpu_custom_call.1} parent=5 // pred_check_branch
        %182 = sbr.rel (%p179) target = $region32
      $region31: #{tpu_custom_call.1} parent=5 // pred_region
        %s183 = ssub.s32 %s16, 1
        %s184 = sand.u32 %s29, 1
        %s185 = scalar_lea.sflag [#allocation3], %s184
        %s186 = sand.u32 %s29, 1
        %s187 = smul.addr %s186, 8
        %s188 = scalar_lea.vmem [#allocation2], %s187
        // Predicated region
        $region33: #{tpu_custom_call.1} parent=31 // pred_check
          %p189 = pneg %p42
        $region34: #{tpu_custom_call.1} parent=31 // pred_check_branch
          %191 = sbr.rel (%p189) target = $region36
        $region35: #{tpu_custom_call.1} parent=31 // pred_region
          %193 = dma.done %s185, 128
        $region36: #{tpu_custom_call.1} parent=31 // pred_fallthru
          _
        // Predicated region
        $region37: #{tpu_custom_call.1} parent=31 // pred_check
          %p194 = pneg %p63
        $region38: #{tpu_custom_call.1} parent=31 // pred_check_branch
          %196 = sbr.rel (%p194) target = $region40
        $region39: #{tpu_custom_call.1} parent=31 // pred_region
          %198 = dma.done [#allocation6], 512
        $region40: #{tpu_custom_call.1} parent=31 // pred_fallthru
          _
        // Predicated region
        $region41: #{tpu_custom_call.1} parent=31 // pred_check
          %p199 = pneg %p84
        $region42: #{tpu_custom_call.1} parent=31 // pred_check_branch
          %201 = sbr.rel (%p199) target = $region44
        $region43: #{tpu_custom_call.1} parent=31 // pred_region
          %203 = dma.done [#allocation6], 192
        $region44: #{tpu_custom_call.1} parent=31 // pred_fallthru
          _
        %s204 = sand.u32 %s29, 1
        %s205 = scalar_lea.sflag [#allocation3], %s204
        %s206 = sand.u32 %s29, 1
        %s207 = smul.addr %s206, 8
        %s208 = scalar_lea.vmem [#allocation2], %s207
        %p209 = pneg %p42
        %p210 = pneg %p39
        %p211 = pneg %p63
        %p212 = pneg %p60
        %p213 = pneg %p84
        %p214 = pneg %p81
        %p215 = pneg %p110
        %p216 = pneg %p107
        %s217 = sand.u32 %s97, 1
        %s218 = scalar_lea.sflag [#allocation4], %s217
        %s219 = sand.u32 %s97, 1
        %s220 = smul.addr %s219, 8
        %s221 = scalar_lea.vmem [#allocation8], %s220
        %v222 = vld [vmem:[%s188] sm:$0xff]
        %v223 = vld [vmem:[#allocation5] sm:$0xff]
        %v224 = vld [vmem:[#allocation5 + $0x8] sm:$0xff]
        %v225 = vld [vmem:[#allocation5 + $0x10] sm:$0x1]
        %v226 = vld [vmem:[#allocation5 + $0x18] sm:$0x1]
        %228 = vst [vmem:[#allocation1] ss:$2 sm:$0xff] %v222
        %v229 = vld.sshfl [vmem:[#allocation1] sm:$0xff pattern:$0x75316420]
        %v230 = vld.sshfl [vmem:[#allocation1 + $0x8] sm:$0xff pattern:$0x75316420]
        %233 = vrot.lane.b32.xlu0 %v229, 17
        %v234 = vpop.permute.xlu0 %233
        %235 = vrot.lane.b32.xlu0 %v230, 17
        %v236 = vpop.permute.xlu0 %235
        %v237 = vlaneseq
        %v238 = vand.u32 %v237, 127
        %vm239 = vcmp.lt.s32.totalorder %v238, 17
        %v240 = vsel %vm239, %v234, %v236
        %v241 = vsel %vm239, %v236, %v234
        %v242 = vperm.slane %v223, 0
        %v243 = vperm.slane %v224, 0
        %v244 = vmul.f32 %v241, %v242
        %v245 = vmul.f32 %v240, %v243
        %246 = vst [vmem:[#allocation1] ss:$2 sm:$0xff] %v222
        %v247 = vld.sshfl [vmem:[#allocation1] sm:$0xff pattern:$0x75316420]
        %v248 = vld.sshfl [vmem:[#allocation1 + $0x8] sm:$0xff pattern:$0x75316420]
        %251 = vrot.lane.b32.xlu0 %v247, 16
        %v252 = vpop.permute.xlu0 %251
        %253 = vrot.lane.b32.xlu0 %v248, 16
        %v254 = vpop.permute.xlu0 %253
        %vm255 = vcmp.lt.s32.totalorder %v238, 16
        %v256 = vsel %vm255, %v252, %v254
        %v257 = vsel %vm255, %v254, %v252
        %v258 = vperm.slane %v223, 1
        %v259 = vperm.slane %v224, 1
        %v260 = vmul.f32 %v257, %v258
        %v261 = vmul.f32 %v256, %v259
        %262 = vst [vmem:[#allocation1] ss:$2 sm:$0xff] %v222
        %v263 = vld.sshfl [vmem:[#allocation1] sm:$0xff pattern:$0x75316420]
        %v264 = vld.sshfl [vmem:[#allocation1 + $0x8] sm:$0xff pattern:$0x75316420]
        %267 = vrot.lane.b32.xlu0 %v263, 15
        %v268 = vpop.permute.xlu0 %267
        %269 = vrot.lane.b32.xlu0 %v264, 15
        %v270 = vpop.permute.xlu0 %269
        %vm271 = vcmp.lt.s32.totalorder %v238, 15
        %v272 = vsel %vm271, %v268, %v270
        %v273 = vsel %vm271, %v270, %v268
        %v274 = vperm.slane %v223, 2
        %v275 = vperm.slane %v224, 2
        %v276 = vmul.f32 %v273, %v274
        %v277 = vmul.f32 %v272, %v275
        %278 = vst [vmem:[#allocation1] ss:$2 sm:$0xff] %v222
        %v279 = vld.sshfl [vmem:[#allocation1] sm:$0xff pattern:$0x75316420]
        %v280 = vld.sshfl [vmem:[#allocation1 + $0x8] sm:$0xff pattern:$0x75316420]
        %283 = vrot.lane.b32.xlu0 %v279, 1
        %v284 = vpop.permute.xlu0 %283
        %285 = vrot.lane.b32.xlu0 %v280, 1
        %v286 = vpop.permute.xlu0 %285
        %vm287 = vcmp.lt.s32.totalorder %v238, 1
        %v288 = vsel %vm287, %v284, %v286
        %v289 = vsel %vm287, %v286, %v284
        %v290 = vperm.slane %v223, 3
        %v291 = vperm.slane %v224, 3
        %v292 = vmul.f32 %v289, %v290
        %v293 = vmul.f32 %v288, %v291
        %294 = vst [vmem:[#allocation1] ss:$2 sm:$0xff] %v222
        %v295 = vld.sshfl [vmem:[#allocation1] sm:$0xff pattern:$0x75316420]
        %v296 = vld.sshfl [vmem:[#allocation1 + $0x8] sm:$0xff pattern:$0x75316420]
        %299 = vrot.lane.b32.xlu0 %v295, 127
        %v300 = vpop.permute.xlu0 %299
        %301 = vrot.lane.b32.xlu0 %v296, 127
        %v302 = vpop.permute.xlu0 %301
        %vm303 = vcmp.lt.s32.totalorder %v238, 127
        %v304 = vsel %vm303, %v300, %v302
        %v305 = vsel %vm303, %v302, %v300
        %v306 = vperm.slane %v223, 5
        %v307 = vperm.slane %v224, 5
        %v308 = vmul.f32 %v304, %v306
        %v309 = vmul.f32 %v305, %v307
        %310 = vst [vmem:[#allocation1] ss:$2 sm:$0xff] %v222
        %v311 = vld.sshfl [vmem:[#allocation1] sm:$0xff pattern:$0x75316420]
        %v312 = vld.sshfl [vmem:[#allocation1 + $0x8] sm:$0xff pattern:$0x75316420]
        %315 = vrot.lane.b32.xlu0 %v311, 113
        %v316 = vpop.permute.xlu0 %315
        %317 = vrot.lane.b32.xlu0 %v312, 113
        %v318 = vpop.permute.xlu0 %317
        %vm319 = vcmp.lt.s32.totalorder %v238, 113
        %v320 = vsel %vm319, %v316, %v318
        %v321 = vsel %vm319, %v318, %v316
        %v322 = vperm.slane %v223, 6
        %v323 = vperm.slane %v224, 6
        %v324 = vmul.f32 %v320, %v322
        %v325 = vmul.f32 %v321, %v323
        %326 = vst [vmem:[#allocation1] ss:$2 sm:$0xff] %v222
        %v327 = vld.sshfl [vmem:[#allocation1] sm:$0xff pattern:$0x75316420]
        %v328 = vld.sshfl [vmem:[#allocation1 + $0x8] sm:$0xff pattern:$0x75316420]
        %331 = vrot.lane.b32.xlu0 %v327, 112
        %v332 = vpop.permute.xlu0 %331
        %333 = vrot.lane.b32.xlu0 %v328, 112
        %v334 = vpop.permute.xlu0 %333
        %vm335 = vcmp.lt.s32.totalorder %v238, 112
        %v336 = vsel %vm335, %v332, %v334
        %v337 = vsel %vm335, %v334, %v332
        %v338 = vperm.slane %v223, 7
        %v339 = vperm.slane %v224, 7
        %v340 = vmul.f32 %v336, %v338
        %v341 = vmul.f32 %v337, %v339
        %342 = vst [vmem:[#allocation1] ss:$2 sm:$0xff] %v222
        %v343 = vld.sshfl [vmem:[#allocation1] sm:$0xff pattern:$0x75316420]
        %v344 = vld.sshfl [vmem:[#allocation1 + $0x8] sm:$0xff pattern:$0x75316420]
        %347 = vrot.lane.b32.xlu0 %v343, 111
        %v348 = vpop.permute.xlu0 %347
        %349 = vrot.lane.b32.xlu0 %v344, 111
        %v350 = vpop.permute.xlu0 %349
        %vm351 = vcmp.lt.s32.totalorder %v238, 111
        %v352 = vsel %vm351, %v348, %v350
        %v353 = vsel %vm351, %v350, %v348
        %v354 = vperm.slane %v225, 0
        %v355 = vperm.slane %v226, 0
        %v356 = vmul.f32 %v352, %v354
        %v357 = vmul.f32 %v353, %v355
        %v360 = vrot.slane %v260, 4
        %v361 = vrot.slane %v261, 4
        %v366 = vrot.slane %v292, 4
        %v367 = vrot.slane %v293, 4
        %370 = vst [vmem:[#allocation1] ss:$2 sm:$0xff] %v222
        %v371 = vld.sshfl [vmem:[#allocation1] sm:$0xff pattern:$0x75316420]
        %v372 = vld.sshfl [vmem:[#allocation1 + $0x8] sm:$0xff pattern:$0x75316420]
        %v377 = vrot.slane %v308, 4
        %v378 = vrot.slane %v309, 4
        %v383 = vrot.slane %v340, 4
        %v384 = vrot.slane %v341, 4
        %vm387 = vcmask 1043456
        %v388 = vsel %vm387, %v244, %v360
        %v389 = vsel %vm387, %v245, %v361
        %v390 = vsel %vm387, %v276, %v366
        %v391 = vsel %vm387, %v277, %v367
        %v392 = vsel %vm387, %v371, %v377
        %v393 = vsel %vm387, %v372, %v378
        %v394 = vsel %vm387, %v324, %v383
        %v395 = vsel %vm387, %v325, %v384
        %v396 = vsel %vm387, %v356, 1.0
        %v397 = vsel %vm387, %v357, 1.0
        %v398 = vld [vmem:[#allocation7] sm:$0xf]
        %vm399 = vcmask 302080
        %v401 = vsel %vm399, %v398, 0
        %vm403 = vcmask 1044480
        %v405 = vsel %vm403, %v396, 0
        %v408 = vsel %vm403, %v397, 0
        %410 = vmatpush.msra.mxu0 0.0
        %411 = vmatpush.msra.mxu0 0.0
        %412 = vmatpush.msra.mxu0 0.0
        %413 = vmatpush.msra.mxu0 0.0
        %414 = vmatpush.msra.mxu0 0.0
        %415 = vmatpush.msra.mxu0 0.0
        %416 = vmatpush.msra.mxu0 0.0
        %417 = vmatpush.msra.mxu0 0.0
        %418 = vmatpush.msra.mxu0 0.0
        %419 = vmatpush.msra.mxu0 0.0
        %420 = vmatpush.msra.mxu0 0.0
        %421 = vmatpush.msra.mxu0 %v405
        %422 = vmatpush.msra.mxu0 %v394
        %423 = vmatpush.msra.mxu0 %v392
        %424 = vmatpush.msra.mxu0 %v390
        %425 = vmatpush.msra.mxu0 %v388
        %426 = vmatmul.f32.gmra.mxu0 %v401
        %v427 = vpop.f32.mrf.mxu0
        %v428 = vadd.f32 0.0, %v427
        %429 = vdwg.mxu0
        %430 = vmatpush.msra.mxu0 0.0
        %431 = vmatpush.msra.mxu0 0.0
        %432 = vmatpush.msra.mxu0 0.0
        %433 = vmatpush.msra.mxu0 0.0
        %434 = vmatpush.msra.mxu0 0.0
        %435 = vmatpush.msra.mxu0 0.0
        %436 = vmatpush.msra.mxu0 0.0
        %437 = vmatpush.msra.mxu0 0.0
        %438 = vmatpush.msra.mxu0 0.0
        %439 = vmatpush.msra.mxu0 0.0
        %440 = vmatpush.msra.mxu0 0.0
        %441 = vmatpush.msra.mxu0 %v408
        %442 = vmatpush.msra.mxu0 %v395
        %443 = vmatpush.msra.mxu0 %v393
        %444 = vmatpush.msra.mxu0 %v391
        %445 = vmatpush.msra.mxu0 %v389
        %446 = vmatmul.f32.gmra.mxu0 %v401
        %v447 = vpop.f32.mrf.mxu0
        %v448 = vadd.f32 0.0, %v447
        %449 = vdwg.mxu0
        %v450 = vmul.f32 %v428, 0.01
        %v451 = vmul.f32 %v448, 0.01
        %v452 = vmax.f32 %v428, %v450
        %v453 = vmax.f32 %v448, %v451
        %v456 = vrot.slane %v453, 4
        %v457 = vsel %vm387, %v452, %v456
        %v459 = vadd.f32 %v222, %v457
        %461 = vst [vmem:[#allocation1] ss:$2 sm:$0xff] %v459
        %v462 = vld.sshfl [vmem:[#allocation1] sm:$0xff pattern:$0x75316420]
        %v463 = vld.sshfl [vmem:[#allocation1 + $0x8] sm:$0xff pattern:$0x75316420]
        %466 = vrot.lane.b32.xlu0 %v462, 17
        %v467 = vpop.permute.xlu0 %466
        %468 = vrot.lane.b32.xlu0 %v463, 17
        %v469 = vpop.permute.xlu0 %468
        %v470 = vsel %vm239, %v467, %v469
        %v471 = vsel %vm239, %v469, %v467
        %v472 = vmul.f32 %v471, %v242
        %v473 = vmul.f32 %v470, %v243
        %474 = vst [vmem:[#allocation1] ss:$2 sm:$0xff] %v459
        %v475 = vld.sshfl [vmem:[#allocation1] sm:$0xff pattern:$0x75316420]
        %v476 = vld.sshfl [vmem:[#allocation1 + $0x8] sm:$0xff pattern:$0x75316420]
        %479 = vrot.lane.b32.xlu0 %v475, 16
        %v480 = vpop.permute.xlu0 %479
        %481 = vrot.lane.b32.xlu0 %v476, 16
        %v482 = vpop.permute.xlu0 %481
        %v483 = vsel %vm255, %v480, %v482
        %v484 = vsel %vm255, %v482, %v480
        %v485 = vmul.f32 %v484, %v258
        %v486 = vmul.f32 %v483, %v259
        %487 = vst [vmem:[#allocation1] ss:$2 sm:$0xff] %v459
        %v488 = vld.sshfl [vmem:[#allocation1] sm:$0xff pattern:$0x75316420]
        %v489 = vld.sshfl [vmem:[#allocation1 + $0x8] sm:$0xff pattern:$0x75316420]
        %492 = vrot.lane.b32.xlu0 %v488, 15
        %v493 = vpop.permute.xlu0 %492
        %494 = vrot.lane.b32.xlu0 %v489, 15
        %v495 = vpop.permute.xlu0 %494
        %v496 = vsel %vm271, %v493, %v495
        %v497 = vsel %vm271, %v495, %v493
        %v498 = vmul.f32 %v497, %v274
        %v499 = vmul.f32 %v496, %v275
        %500 = vst [vmem:[#allocation1] ss:$2 sm:$0xff] %v459
        %v501 = vld.sshfl [vmem:[#allocation1] sm:$0xff pattern:$0x75316420]
        %v502 = vld.sshfl [vmem:[#allocation1 + $0x8] sm:$0xff pattern:$0x75316420]
        %505 = vrot.lane.b32.xlu0 %v501, 1
        %v506 = vpop.permute.xlu0 %505
        %507 = vrot.lane.b32.xlu0 %v502, 1
        %v508 = vpop.permute.xlu0 %507
        %v509 = vsel %vm287, %v506, %v508
        %v510 = vsel %vm287, %v508, %v506
        %v511 = vmul.f32 %v510, %v290
        %v512 = vmul.f32 %v509, %v291
        %513 = vst [vmem:[#allocation1] ss:$2 sm:$0xff] %v459
        %v514 = vld.sshfl [vmem:[#allocation1] sm:$0xff pattern:$0x75316420]
        %v515 = vld.sshfl [vmem:[#allocation1 + $0x8] sm:$0xff pattern:$0x75316420]
        %518 = vrot.lane.b32.xlu0 %v514, 127
        %v519 = vpop.permute.xlu0 %518
        %520 = vrot.lane.b32.xlu0 %v515, 127
        %v521 = vpop.permute.xlu0 %520
        %v522 = vsel %vm303, %v519, %v521
        %v523 = vsel %vm303, %v521, %v519
        %v524 = vmul.f32 %v522, %v306
        %v525 = vmul.f32 %v523, %v307
        %526 = vst [vmem:[#allocation1] ss:$2 sm:$0xff] %v459
        %v527 = vld.sshfl [vmem:[#allocation1] sm:$0xff pattern:$0x75316420]
        %v528 = vld.sshfl [vmem:[#allocation1 + $0x8] sm:$0xff pattern:$0x75316420]
        %531 = vrot.lane.b32.xlu0 %v527, 113
        %v532 = vpop.permute.xlu0 %531
        %533 = vrot.lane.b32.xlu0 %v528, 113
        %v534 = vpop.permute.xlu0 %533
        %v535 = vsel %vm319, %v532, %v534
        %v536 = vsel %vm319, %v534, %v532
        %v537 = vmul.f32 %v535, %v322
        %v538 = vmul.f32 %v536, %v323
        %539 = vst [vmem:[#allocation1] ss:$2 sm:$0xff] %v459
        %v540 = vld.sshfl [vmem:[#allocation1] sm:$0xff pattern:$0x75316420]
        %v541 = vld.sshfl [vmem:[#allocation1 + $0x8] sm:$0xff pattern:$0x75316420]
        %544 = vrot.lane.b32.xlu0 %v540, 112
        %v545 = vpop.permute.xlu0 %544
        %546 = vrot.lane.b32.xlu0 %v541, 112
        %v547 = vpop.permute.xlu0 %546
        %v548 = vsel %vm335, %v545, %v547
        %v549 = vsel %vm335, %v547, %v545
        %v550 = vmul.f32 %v548, %v338
        %v551 = vmul.f32 %v549, %v339
        %552 = vst [vmem:[#allocation1] ss:$2 sm:$0xff] %v459
        %v553 = vld.sshfl [vmem:[#allocation1] sm:$0xff pattern:$0x75316420]
        %v554 = vld.sshfl [vmem:[#allocation1 + $0x8] sm:$0xff pattern:$0x75316420]
        %557 = vrot.lane.b32.xlu0 %v553, 111
        %v558 = vpop.permute.xlu0 %557
        %559 = vrot.lane.b32.xlu0 %v554, 111
        %v560 = vpop.permute.xlu0 %559
        %v561 = vsel %vm351, %v558, %v560
        %v562 = vsel %vm351, %v560, %v558
        %v563 = vmul.f32 %v561, %v354
        %v564 = vmul.f32 %v562, %v355
        %v567 = vrot.slane %v485, 4
        %v568 = vrot.slane %v486, 4
        %v573 = vrot.slane %v511, 4
        %v574 = vrot.slane %v512, 4
        %577 = vst [vmem:[#allocation1] ss:$2 sm:$0xff] %v459
        %v578 = vld.sshfl [vmem:[#allocation1] sm:$0xff pattern:$0x75316420]
        %v579 = vld.sshfl [vmem:[#allocation1 + $0x8] sm:$0xff pattern:$0x75316420]
        %v584 = vrot.slane %v524, 4
        %v585 = vrot.slane %v525, 4
        %v590 = vrot.slane %v550, 4
        %v591 = vrot.slane %v551, 4
        %v594 = vsel %vm387, %v472, %v567
        %v595 = vsel %vm387, %v473, %v568
        %v596 = vsel %vm387, %v498, %v573
        %v597 = vsel %vm387, %v499, %v574
        %v598 = vsel %vm387, %v578, %v584
        %v599 = vsel %vm387, %v579, %v585
        %v600 = vsel %vm387, %v537, %v590
        %v601 = vsel %vm387, %v538, %v591
        %v602 = vsel %vm387, %v563, 1.0
        %v603 = vsel %vm387, %v564, 1.0
        %s604 = scalar_lea.vmem [#allocation7], 4
        %v605 = vld [vmem:[%s604] sm:$0xf]
        %v607 = vsel %vm399, %v605, 0
        %v610 = vsel %vm403, %v602, 0
        %v613 = vsel %vm403, %v603, 0
        %615 = vmatpush.msra.mxu0 0.0
        %616 = vmatpush.msra.mxu0 0.0
        %617 = vmatpush.msra.mxu0 0.0
        %618 = vmatpush.msra.mxu0 0.0
        %619 = vmatpush.msra.mxu0 0.0
        %620 = vmatpush.msra.mxu0 0.0
        %621 = vmatpush.msra.mxu0 0.0
        %622 = vmatpush.msra.mxu0 0.0
        %623 = vmatpush.msra.mxu0 0.0
        %624 = vmatpush.msra.mxu0 0.0
        %625 = vmatpush.msra.mxu0 0.0
        %626 = vmatpush.msra.mxu0 %v610
        %627 = vmatpush.msra.mxu0 %v600
        %628 = vmatpush.msra.mxu0 %v598
        %629 = vmatpush.msra.mxu0 %v596
        %630 = vmatpush.msra.mxu0 %v594
        %631 = vmatmul.f32.gmra.mxu0 %v607
        %v632 = vpop.f32.mrf.mxu0
        %v633 = vadd.f32 0.0, %v632
        %634 = vdwg.mxu0
        %635 = vmatpush.msra.mxu0 0.0
        %636 = vmatpush.msra.mxu0 0.0
        %637 = vmatpush.msra.mxu0 0.0
        %638 = vmatpush.msra.mxu0 0.0
        %639 = vmatpush.msra.mxu0 0.0
        %640 = vmatpush.msra.mxu0 0.0
        %641 = vmatpush.msra.mxu0 0.0
        %642 = vmatpush.msra.mxu0 0.0
        %643 = vmatpush.msra.mxu0 0.0
        %644 = vmatpush.msra.mxu0 0.0
        %645 = vmatpush.msra.mxu0 0.0
        %646 = vmatpush.msra.mxu0 %v613
        %647 = vmatpush.msra.mxu0 %v601
        %648 = vmatpush.msra.mxu0 %v599
        %649 = vmatpush.msra.mxu0 %v597
        %650 = vmatpush.msra.mxu0 %v595
        %651 = vmatmul.f32.gmra.mxu0 %v607
        %v652 = vpop.f32.mrf.mxu0
        %v653 = vadd.f32 0.0, %v652
        %654 = vdwg.mxu0
        %v655 = vmul.f32 %v633, 0.01
        %v656 = vmul.f32 %v653, 0.01
        %v657 = vmax.f32 %v633, %v655
        %v658 = vmax.f32 %v653, %v656
        %v659 = vmul.f32 %v222, 4.0
        %v660 = vmul.f32 %v452, 2.0
        %v661 = vmul.f32 %v453, 2.0
        %v664 = vrot.slane %v661, 4
        %v665 = vsel %vm387, %v660, %v664
        %v667 = vadd.f32 %v659, %v665
        %v670 = vrot.slane %v658, 4
        %v671 = vsel %vm387, %v657, %v670
        %v673 = vadd.f32 %v667, %v671
        %675 = vst [vmem:[#allocation1] ss:$2 sm:$0xff] %v673
        %v676 = vld.sshfl [vmem:[#allocation1] sm:$0xff pattern:$0x75316420]
        %v677 = vld.sshfl [vmem:[#allocation1 + $0x8] sm:$0xff pattern:$0x75316420]
        %680 = vrot.lane.b32.xlu0 %v676, 17
        %v681 = vpop.permute.xlu0 %680
        %682 = vrot.lane.b32.xlu0 %v677, 17
        %v683 = vpop.permute.xlu0 %682
        %v684 = vsel %vm239, %v681, %v683
        %v685 = vsel %vm239, %v683, %v681
        %v686 = vmul.f32 %v685, %v242
        %v687 = vmul.f32 %v684, %v243
        %688 = vst [vmem:[#allocation1] ss:$2 sm:$0xff] %v673
        %v689 = vld.sshfl [vmem:[#allocation1] sm:$0xff pattern:$0x75316420]
        %v690 = vld.sshfl [vmem:[#allocation1 + $0x8] sm:$0xff pattern:$0x75316420]
        %693 = vrot.lane.b32.xlu0 %v689, 16
        %v694 = vpop.permute.xlu0 %693
        %695 = vrot.lane.b32.xlu0 %v690, 16
        %v696 = vpop.permute.xlu0 %695
        %v697 = vsel %vm255, %v694, %v696
        %v698 = vsel %vm255, %v696, %v694
        %v699 = vmul.f32 %v698, %v258
        %v700 = vmul.f32 %v697, %v259
        %701 = vst [vmem:[#allocation1] ss:$2 sm:$0xff] %v673
        %v702 = vld.sshfl [vmem:[#allocation1] sm:$0xff pattern:$0x75316420]
        %v703 = vld.sshfl [vmem:[#allocation1 + $0x8] sm:$0xff pattern:$0x75316420]
        %706 = vrot.lane.b32.xlu0 %v702, 15
        %v707 = vpop.permute.xlu0 %706
        %708 = vrot.lane.b32.xlu0 %v703, 15
        %v709 = vpop.permute.xlu0 %708
        %v710 = vsel %vm271, %v707, %v709
        %v711 = vsel %vm271, %v709, %v707
        %v712 = vmul.f32 %v711, %v274
        %v713 = vmul.f32 %v710, %v275
        %714 = vst [vmem:[#allocation1] ss:$2 sm:$0xff] %v673
        %v715 = vld.sshfl [vmem:[#allocation1] sm:$0xff pattern:$0x75316420]
        %v716 = vld.sshfl [vmem:[#allocation1 + $0x8] sm:$0xff pattern:$0x75316420]
        %719 = vrot.lane.b32.xlu0 %v715, 1
        %v720 = vpop.permute.xlu0 %719
        %721 = vrot.lane.b32.xlu0 %v716, 1
        %v722 = vpop.permute.xlu0 %721
        %v723 = vsel %vm287, %v720, %v722
        %v724 = vsel %vm287, %v722, %v720
        %v725 = vmul.f32 %v724, %v290
        %v726 = vmul.f32 %v723, %v291
        %727 = vst [vmem:[#allocation1] ss:$2 sm:$0xff] %v673
        %v728 = vld.sshfl [vmem:[#allocation1] sm:$0xff pattern:$0x75316420]
        %v729 = vld.sshfl [vmem:[#allocation1 + $0x8] sm:$0xff pattern:$0x75316420]
        %732 = vrot.lane.b32.xlu0 %v728, 127
        %v733 = vpop.permute.xlu0 %732
        %734 = vrot.lane.b32.xlu0 %v729, 127
        %v735 = vpop.permute.xlu0 %734
        %v736 = vsel %vm303, %v733, %v735
        %v737 = vsel %vm303, %v735, %v733
        %v738 = vmul.f32 %v736, %v306
        %v739 = vmul.f32 %v737, %v307
        %740 = vst [vmem:[#allocation1] ss:$2 sm:$0xff] %v673
        %v741 = vld.sshfl [vmem:[#allocation1] sm:$0xff pattern:$0x75316420]
        %v742 = vld.sshfl [vmem:[#allocation1 + $0x8] sm:$0xff pattern:$0x75316420]
        %745 = vrot.lane.b32.xlu0 %v741, 113
        %v746 = vpop.permute.xlu0 %745
        %747 = vrot.lane.b32.xlu0 %v742, 113
        %v748 = vpop.permute.xlu0 %747
        %v749 = vsel %vm319, %v746, %v748
        %v750 = vsel %vm319, %v748, %v746
        %v751 = vmul.f32 %v749, %v322
        %v752 = vmul.f32 %v750, %v323
        %753 = vst [vmem:[#allocation1] ss:$2 sm:$0xff] %v673
        %v754 = vld.sshfl [vmem:[#allocation1] sm:$0xff pattern:$0x75316420]
        %v755 = vld.sshfl [vmem:[#allocation1 + $0x8] sm:$0xff pattern:$0x75316420]
        %758 = vrot.lane.b32.xlu0 %v754, 112
        %v759 = vpop.permute.xlu0 %758
        %760 = vrot.lane.b32.xlu0 %v755, 112
        %v761 = vpop.permute.xlu0 %760
        %v762 = vsel %vm335, %v759, %v761
        %v763 = vsel %vm335, %v761, %v759
        %v764 = vmul.f32 %v762, %v338
        %v765 = vmul.f32 %v763, %v339
        %766 = vst [vmem:[#allocation1] ss:$2 sm:$0xff] %v673
        %v767 = vld.sshfl [vmem:[#allocation1] sm:$0xff pattern:$0x75316420]
        %v768 = vld.sshfl [vmem:[#allocation1 + $0x8] sm:$0xff pattern:$0x75316420]
        %771 = vrot.lane.b32.xlu0 %v767, 111
        %v772 = vpop.permute.xlu0 %771
        %773 = vrot.lane.b32.xlu0 %v768, 111
        %v774 = vpop.permute.xlu0 %773
        %v775 = vsel %vm351, %v772, %v774
        %v776 = vsel %vm351, %v774, %v772
        %v777 = vmul.f32 %v775, %v354
        %v778 = vmul.f32 %v776, %v355
        %v781 = vrot.slane %v699, 4
        %v782 = vrot.slane %v700, 4
        %v787 = vrot.slane %v725, 4
        %v788 = vrot.slane %v726, 4
        %791 = vst [vmem:[#allocation1] ss:$2 sm:$0xff] %v673
        %v792 = vld.sshfl [vmem:[#allocation1] sm:$0xff pattern:$0x75316420]
        %v793 = vld.sshfl [vmem:[#allocation1 + $0x8] sm:$0xff pattern:$0x75316420]
        %v798 = vrot.slane %v738, 4
        %v799 = vrot.slane %v739, 4
        %v804 = vrot.slane %v764, 4
        %v805 = vrot.slane %v765, 4
        %v808 = vsel %vm387, %v686, %v781
        %v809 = vsel %vm387, %v687, %v782
        %v810 = vsel %vm387, %v712, %v787
        %v811 = vsel %vm387, %v713, %v788
        %v812 = vsel %vm387, %v792, %v798
        %v813 = vsel %vm387, %v793, %v799
        %v814 = vsel %vm387, %v751, %v804
        %v815 = vsel %vm387, %v752, %v805
        %v816 = vsel %vm387, %v777, 1.0
        %v817 = vsel %vm387, %v778, 1.0
        %s818 = scalar_lea.vmem [#allocation7], 8
        %v819 = vld [vmem:[%s818] sm:$0xf]
        %v821 = vsel %vm399, %v819, 0
        %v824 = vsel %vm403, %v816, 0
        %v827 = vsel %vm403, %v817, 0
        %829 = vmatpush.msra.mxu0 0.0
        %830 = vmatpush.msra.mxu0 0.0
        %831 = vmatpush.msra.mxu0 0.0
        %832 = vmatpush.msra.mxu0 0.0
        %833 = vmatpush.msra.mxu0 0.0
        %834 = vmatpush.msra.mxu0 0.0
        %835 = vmatpush.msra.mxu0 0.0
        %836 = vmatpush.msra.mxu0 0.0
        %837 = vmatpush.msra.mxu0 0.0
        %838 = vmatpush.msra.mxu0 0.0
        %839 = vmatpush.msra.mxu0 0.0
        %840 = vmatpush.msra.mxu0 %v824
        %841 = vmatpush.msra.mxu0 %v814
        %842 = vmatpush.msra.mxu0 %v812
        %843 = vmatpush.msra.mxu0 %v810
        %844 = vmatpush.msra.mxu0 %v808
        %845 = vmatmul.f32.gmra.mxu0 %v821
        %v846 = vpop.f32.mrf.mxu0
        %v847 = vadd.f32 0.0, %v846
        %848 = vdwg.mxu0
        %849 = vmatpush.msra.mxu0 0.0
        %850 = vmatpush.msra.mxu0 0.0
        %851 = vmatpush.msra.mxu0 0.0
        %852 = vmatpush.msra.mxu0 0.0
        %853 = vmatpush.msra.mxu0 0.0
        %854 = vmatpush.msra.mxu0 0.0
        %855 = vmatpush.msra.mxu0 0.0
        %856 = vmatpush.msra.mxu0 0.0
        %857 = vmatpush.msra.mxu0 0.0
        %858 = vmatpush.msra.mxu0 0.0
        %859 = vmatpush.msra.mxu0 0.0
        %860 = vmatpush.msra.mxu0 %v827
        %861 = vmatpush.msra.mxu0 %v815
        %862 = vmatpush.msra.mxu0 %v813
        %863 = vmatpush.msra.mxu0 %v811
        %864 = vmatpush.msra.mxu0 %v809
        %865 = vmatmul.f32.gmra.mxu0 %v821
        %v866 = vpop.f32.mrf.mxu0
        %v867 = vadd.f32 0.0, %v866
        %868 = vdwg.mxu0
        %v869 = vmul.f32 %v847, 0.5
        %v870 = vmul.f32 %v867, 0.5
        %v873 = vrot.slane %v870, 4
        %v874 = vsel %vm387, %v869, %v873
        %v876 = vadd.f32 %v222, %v874
        %877 = vst [vmem:[%s221] sm:$0xff] %v876
        %s878 = sand.u32 %s97, 1
        %s879 = scalar_lea.sflag [#allocation4], %s878
        %s880 = sand.u32 %s97, 1
        %s881 = smul.addr %s880, 8
        %s882 = scalar_lea.vmem [#allocation8], %s881
        // Predicated region
        $region45: #{tpu_custom_call.1} parent=31 // pred_check
          %p883 = pneg %p107
        $region46: #{tpu_custom_call.1} parent=31 // pred_check_branch
          %885 = sbr.rel (%p883) target = $region48
        $region47: #{tpu_custom_call.1} parent=31 // pred_region
          %887 = vsyncadd %s879, 0
          %s888 = smul.addr %s21, 2
          %s889 = smul.addr %s888, 4
          %s890 = scalar_lea.hbm %s3, %s889
          %s892 = sshll.u32 %s882, 4
          %s893 = int_to_ptr.vmem [resolvable:$true] %s892
          %s894 = sshll.u32 %s890, 4
          %s895 = int_to_ptr.hbm [resolvable:$true] %s894
          %897 = dma.vmem_to_hbm [thread:$0]  %s893, 128, %s895, %s879
        $region48: #{tpu_custom_call.1} parent=31 // pred_fallthru
          _
      $region32: #{tpu_custom_call.1} parent=5 // pred_fallthru
        _
      %p898 = scmp.le.s32.totalorder 2, %s16
      // Predicated region
      $region49: #{tpu_custom_call.1} parent=5 // pred_check
        %p899 = pneg %p898
      $region50: #{tpu_custom_call.1} parent=5 // pred_check_branch
        %901 = sbr.rel (%p899) target = $region52
      $region51: #{tpu_custom_call.1} parent=5 // pred_region
        %s902 = ssub.s32 %s16, 2
        // Predicated region
        $region53: #{tpu_custom_call.1} parent=51 // pred_check
          %p903 = pneg %p113
        $region54: #{tpu_custom_call.1} parent=51 // pred_check_branch
          %905 = sbr.rel (%p903) target = $region56
        $region55: #{tpu_custom_call.1} parent=51 // pred_region
          %s906 = sand.u32 %s98, 1
          %s907 = scalar_lea.sflag [#allocation4], %s906
          %s908 = sand.u32 %s98, 1
          %s909 = smul.addr %s908, 8
          %s910 = scalar_lea.vmem [#allocation8], %s909
          %912 = dma.done %s907, 128
        $region56: #{tpu_custom_call.1} parent=51 // pred_fallthru
          _
      $region52: #{tpu_custom_call.1} parent=5 // pred_fallthru
        _
    $region6: #{tpu_custom_call.1} parent=1 // loop_footer
      %s20 = sadd.s32 1, %s16
    $region7: #{tpu_custom_call.1} parent=1 // loop_footer_branch
      %15 = sbr.rel target = $region3
    $region8: #{tpu_custom_call.1} parent=1 // loop_exit
      _
    %913 = vsyncpa [#allocation3], 1
    %s914 = scalar_lea.sflag [#allocation3], 1
    %915 = vsyncpa %s914, 1
    %916 = vsyncpa [#allocation6], 1
    %917 = vsyncpa [#allocation4], 1
    %s918 = scalar_lea.sflag [#allocation4], 1
    %919 = vsyncpa %s918, 1

</llo_original>
